<compile_context>
chip_gen: v6e
topology: v6e:2x2x1
jax: 0.10.0
libtpu: 0.0.40
codegen_flags: <defaults>
</compile_context>

<pallas_src>
import functools

import jax
import jax.numpy as jnp
from jax.experimental import pallas as pl
from jax.experimental.pallas import tpu as pltpu


def multimodal_fusion_kernel(
    img_ref, gene_ref,
    w_img_ref, b_img_ref,     # 5.0 * image_proj (folded)
    w_gene_ref, b_gene_ref,   # 1e-4 * gene_proj (folded: gene_weight * final 0.01)
    w_v_ref,                  # to_kv weight, V half only: W_kv[:, D:]
    w_out_ref, b_out_ref,     # to_out
    out_ref,
    *, compute_dtype,
):
    # F.normalize(x, dim=-1, eps=1e-12): x / max(||x||, eps) == x * rsqrt(max(||x||^2, eps^2))
    eps2 = 1e-24
    img = img_ref[...].astype(jnp.float32)
    gene = gene_ref[...].astype(jnp.float32)

    img_n = img * jax.lax.rsqrt(
        jnp.maximum(jnp.sum(img * img, axis=-1, keepdims=True), eps2))
    gene_n = gene * jax.lax.rsqrt(
        jnp.maximum(jnp.sum(gene * gene, axis=-1, keepdims=True), eps2))

    # Projections (scalar weights already folded into the weight matrices / biases).
    image_f = (jnp.dot(img_n.astype(compute_dtype), w_img_ref[...],
                       preferred_element_type=jnp.float32) + b_img_ref[...])
    gene_t = (jnp.dot(gene_n.astype(compute_dtype), w_gene_ref[...],
                      preferred_element_type=jnp.float32) + b_gene_ref[...])

    # Cross-attention with a single key/value token: softmax over a length-1 key axis is
    # identically 1, so attention output == V exactly.  q, scores, exp, and the per-head
    # reduce/broadcast are elided; only the V half of to_kv is computed.
    # TODO(synk): nn.Dropout(p=0.1) on the attention weights is identity at inference.
    v = jnp.dot(image_f.astype(compute_dtype), w_v_ref[...],
                preferred_element_type=jnp.float32)

    out = (jnp.dot(v.astype(compute_dtype), w_out_ref[...],
                   preferred_element_type=jnp.float32) + b_out_ref[...])

    out_ref[...] = (out + gene_t).astype(out_ref.dtype)


def _round_up(x, m):
    return ((x + m - 1) // m) * m


def prepare_params(params, compute_dtype=jnp.bfloat16):
    """One-time host-side param prep: fold constant scalars, slice V half, cast weights."""
    D = params["w_img"].shape[1]
    return {
        "w_img": (5.0 * params["w_img"]).astype(compute_dtype),
        "b_img": (5.0 * params["b_img"]).astype(jnp.float32),
        "w_gene": (1e-4 * params["w_gene"]).astype(compute_dtype),   # 0.01 (gene_weight) * 0.01 (final add)
        "b_gene": (1e-4 * params["b_gene"]).astype(jnp.float32),
        "w_v": params["w_kv"][:, D:].astype(compute_dtype),          # V half of to_kv
        "w_out": params["w_out"].astype(compute_dtype),
        "b_out": params["b_out"].astype(jnp.float32),
    }


def multimodal_fusion(img, gene, prep, *, block_b=256):
    B, image_dim = img.shape
    _, gene_dim = gene.shape
    D = prep["w_img"].shape[1]
    compute_dtype = prep["w_img"].dtype
    wbytes = jnp.dtype(compute_dtype).itemsize

    # Batch tile: multiple of 8 sublanes, up to block_b rows per grid step.
    TB = _round_up(min(block_b, _round_up(B, 8)), 8)
    grid = (pl.cdiv(B, TB),)

    def resident(shape):
        # Grid-invariant block: same block index every step -> weights stay in VMEM.
        return pl.BlockSpec(shape, lambda i: (0,) * len(shape))

    # VMEM budget: weights + double-buffered activation tiles, capped for v7x (64 MiB).
    weight_bytes = (image_dim + gene_dim + 2 * D) * D * wbytes + 3 * D * 4
    act_bytes = TB * (image_dim + gene_dim + D) * 4
    vmem_limit = int(min(max(2 * (weight_bytes + act_bytes) + (8 << 20), 16 << 20),
                         64 << 20))

    grid_spec = pltpu.PrefetchScalarGridSpec(
        num_scalar_prefetch=0,
        grid=grid,
        in_specs=[
            pl.BlockSpec((TB, image_dim), lambda i: (i, 0)),
            pl.BlockSpec((TB, gene_dim), lambda i: (i, 0)),
            resident((image_dim, D)),
            resident((1, D)),
            resident((gene_dim, D)),
            resident((1, D)),
            resident((D, D)),
            resident((D, D)),
            resident((1, D)),
        ],
        out_specs=pl.BlockSpec((TB, D), lambda i: (i, 0)),
    )

    kernel = functools.partial(multimodal_fusion_kernel, compute_dtype=compute_dtype)

    return pl.pallas_call(
        kernel,
        out_shape=jax.ShapeDtypeStruct((B, D), jnp.float32),
        grid_spec=grid_spec,
        compiler_params=pltpu.CompilerParams(
            dimension_semantics=("parallel",),
            vmem_limit_bytes=vmem_limit),
    )(img, gene,
      prep["w_img"], prep["b_img"],
      prep["w_gene"], prep["b_gene"],
      prep["w_v"], prep["w_out"], prep["b_out"])


def _kaiming_uniform(key, fan_in, fan_out):
    # PyTorch kaiming_uniform_(mode='fan_in', nonlinearity='relu'):
    # bound = sqrt(6 / fan_in); weight stored here as (fan_in, fan_out).
    bound = (6.0 / fan_in) ** 0.5
    return jax.random.uniform(key, (fan_in, fan_out), jnp.float32, -bound, bound)


def init_params(key, image_dim, gene_dim, fusion_dim):
    ks = jax.random.split(key, 6)
    return {
        "w_img": _kaiming_uniform(ks[0], image_dim, fusion_dim),
        "b_img": jnp.zeros((1, fusion_dim), jnp.float32),
        "w_gene": _kaiming_uniform(ks[1], gene_dim, fusion_dim),
        "b_gene": jnp.zeros((1, fusion_dim), jnp.float32),
        "w_q": _kaiming_uniform(ks[2], fusion_dim, fusion_dim),
        "w_kv": _kaiming_uniform(ks[3], fusion_dim, 2 * fusion_dim),
        "w_out": _kaiming_uniform(ks[4], fusion_dim, fusion_dim),
        "b_out": jnp.zeros((1, fusion_dim), jnp.float32),
    }


def reference_forward(img, gene, params, *, num_heads):
    """Pure-JAX f32 replica of the PyTorch forward (eval mode), full attention path."""
    D = params["w_img"].shape[1]
    head_dim = D // num_heads
    scale = float(head_dim) ** -0.5
    eps = 1e-12
    img_n = img / jnp.maximum(jnp.linalg.norm(img, axis=-1, keepdims=True), eps)
    gene_n = gene / jnp.maximum(jnp.linalg.norm(gene, axis=-1, keepdims=True), eps)
    image_f = (img_n @ params["w_img"] + params["b_img"]) * 5.0
    gene_f = (gene_n @ params["w_gene"] + params["b_gene"]) * 0.01
    B = img.shape[0]
    q = (image_f @ params["w_q"]).reshape(B, num_heads, 1, head_dim)
    kv = (image_f @ params["w_kv"]).reshape(B, 1, 2, num_heads, head_dim)
    kv = jnp.transpose(kv, (2, 0, 3, 1, 4))
    k, v = kv[0], kv[1]
    attn = jnp.einsum("bhid,bhjd->bhij", q, k) * scale
    attn = jax.nn.softmax(attn, axis=-1)
    out = jnp.einsum("bhij,bhjd->bhid", attn, v)
    out = jnp.transpose(out, (0, 2, 1, 3)).reshape(B, D)
    out = out @ params["w_out"] + params["b_out"]
    return out + 0.01 * gene_f


def matched_reference(img, gene, prep):
    """Pure-JAX replica of the kernel math (same folds / casts) for bf16 validation."""
    cdt = prep["w_img"].dtype
    eps2 = 1e-24
    img = img.astype(jnp.float32)
    gene = gene.astype(jnp.float32)
    img_n = img * jax.lax.rsqrt(jnp.maximum(jnp.sum(img * img, -1, keepdims=True), eps2))
    gene_n = gene * jax.lax.rsqrt(jnp.maximum(jnp.sum(gene * gene, -1, keepdims=True), eps2))
    image_f = jnp.dot(img_n.astype(cdt), prep["w_img"],
                      preferred_element_type=jnp.float32) + prep["b_img"]
    gene_t = jnp.dot(gene_n.astype(cdt), prep["w_gene"],
                     preferred_element_type=jnp.float32) + prep["b_gene"]
    v = jnp.dot(image_f.astype(cdt), prep["w_v"], preferred_element_type=jnp.float32)
    out = jnp.dot(v.astype(cdt), prep["w_out"],
                  preferred_element_type=jnp.float32) + prep["b_out"]
    return out + gene_t


if __name__ == "__main__":
    B, image_dim, gene_dim, fusion_dim, num_heads = 8, 32, 16, 64, 8

    key = jax.random.PRNGKey(0)
    k_img, k_gene, k_params = jax.random.split(key, 3)
    image_features = jax.random.normal(k_img, (B, image_dim), jnp.float32)
    gene_features = jax.random.normal(k_gene, (B, gene_dim), jnp.float32)
    params = init_params(k_params, image_dim, gene_dim, fusion_dim)

    # 1) Exact-semantics check: f32 compute path vs. the faithful PyTorch-forward replica.
    prep_f32 = prepare_params(params, compute_dtype=jnp.float32)
    out_f32 = jax.block_until_ready(
        multimodal_fusion(image_features, gene_features, prep_f32))
    ref = reference_forward(image_features, gene_features, params, num_heads=num_heads)
    assert out_f32.shape == (B, fusion_dim)
    assert jnp.allclose(out_f32, ref, atol=1e-4, rtol=1e-4), "f32 mismatch vs reference"

    # 2) Default fast path: bf16 matmul operands / f32 accumulation & elementwise.
    prep_bf16 = prepare_params(params, compute_dtype=jnp.bfloat16)
    out_bf16 = jax.block_until_ready(
        multimodal_fusion(image_features, gene_features, prep_bf16))
    ref_bf16 = matched_reference(image_features, gene_features, prep_bf16)
    assert out_bf16.shape == (B, fusion_dim)
    assert jnp.allclose(out_bf16, ref_bf16, atol=1e-3, rtol=1e-3), \
        "bf16 mismatch vs matched reference"

    print("KERNEL_OK")
</pallas_src>

<mosaic_0001>
module attributes {stable_mosaic.version = 11 : i64} {
  func.func @multimodal_fusion_kernel(%arg0: i32, %arg1: memref<8x32xf32, #tpu.memory_space<vmem>>, %arg2: memref<8x16xf32, #tpu.memory_space<vmem>>, %arg3: memref<32x64xf32, #tpu.memory_space<vmem>>, %arg4: memref<1x64xf32, #tpu.memory_space<vmem>>, %arg5: memref<16x64xf32, #tpu.memory_space<vmem>>, %arg6: memref<1x64xf32, #tpu.memory_space<vmem>>, %arg7: memref<64x64xf32, #tpu.memory_space<vmem>>, %arg8: memref<64x64xf32, #tpu.memory_space<vmem>>, %arg9: memref<1x64xf32, #tpu.memory_space<vmem>>, %arg10: memref<8x64xf32, #tpu.memory_space<vmem>>) attributes {dimension_semantics = [#tpu.dimension_semantics<parallel>], iteration_bounds = array<i64: 1>, scalar_prefetch = 0 : i64, scratch_operands = 0 : i64, tpu.core_type = #tpu.core_type<tc>, window_params = [{transform_indices = @transform_0, window_bounds = array<i64: 8, 32>}, {transform_indices = @transform_1, window_bounds = array<i64: 8, 16>}, {pipeline_mode = #tpu.pipeline_mode<synchronous>, transform_indices = @transform_2, window_bounds = array<i64: 32, 64>}, {pipeline_mode = #tpu.pipeline_mode<synchronous>, transform_indices = @transform_3, window_bounds = array<i64: 1, 64>}, {pipeline_mode = #tpu.pipeline_mode<synchronous>, transform_indices = @transform_4, window_bounds = array<i64: 16, 64>}, {pipeline_mode = #tpu.pipeline_mode<synchronous>, transform_indices = @transform_5, window_bounds = array<i64: 1, 64>}, {pipeline_mode = #tpu.pipeline_mode<synchronous>, transform_indices = @transform_6, window_bounds = array<i64: 64, 64>}, {pipeline_mode = #tpu.pipeline_mode<synchronous>, transform_indices = @transform_7, window_bounds = array<i64: 64, 64>}, {pipeline_mode = #tpu.pipeline_mode<synchronous>, transform_indices = @transform_8, window_bounds = array<i64: 1, 64>}, {transform_indices = @transform_9, window_bounds = array<i64: 8, 64>}]} {
    %c0 = arith.constant 0 : index
    %c0_0 = arith.constant 0 : index
    %0 = vector.load %arg1[%c0, %c0_0] : memref<8x32xf32, #tpu.memory_space<vmem>>, vector<8x32xf32>
    %c0_1 = arith.constant 0 : index
    %c0_2 = arith.constant 0 : index
    %1 = vector.load %arg2[%c0_1, %c0_2] : memref<8x16xf32, #tpu.memory_space<vmem>>, vector<8x16xf32>
    %2 = arith.mulf %0, %0 : vector<8x32xf32>
    %cst = arith.constant dense<0.000000e+00> : vector<8xf32>
    %3 = vector.multi_reduction <add>, %2, %cst [1] : vector<8x32xf32> to vector<8xf32>
    %4 = vector.shape_cast %3 : vector<8xf32> to vector<8x1xf32>
    %cst_3 = arith.constant 1.000000e-24 : f32
    %5 = vector.broadcast %cst_3 : f32 to vector<8x1xf32>
    %6 = arith.maximumf %4, %5 : vector<8x1xf32>
    %7 = math.rsqrt %6 : vector<8x1xf32>
    %8 = vector.broadcast %7 : vector<8x1xf32> to vector<8x32xf32>
    %9 = arith.mulf %0, %8 : vector<8x32xf32>
    %10 = arith.mulf %1, %1 : vector<8x16xf32>
    %cst_4 = arith.constant dense<0.000000e+00> : vector<8xf32>
    %11 = vector.multi_reduction <add>, %10, %cst_4 [1] : vector<8x16xf32> to vector<8xf32>
    %12 = vector.shape_cast %11 : vector<8xf32> to vector<8x1xf32>
    %cst_5 = arith.constant 1.000000e-24 : f32
    %13 = vector.broadcast %cst_5 : f32 to vector<8x1xf32>
    %14 = arith.maximumf %12, %13 : vector<8x1xf32>
    %15 = math.rsqrt %14 : vector<8x1xf32>
    %16 = vector.broadcast %15 : vector<8x1xf32> to vector<8x16xf32>
    %17 = arith.mulf %1, %16 : vector<8x16xf32>
    %c0_6 = arith.constant 0 : index
    %c0_7 = arith.constant 0 : index
    %18 = vector.load %arg3[%c0_6, %c0_7] : memref<32x64xf32, #tpu.memory_space<vmem>>, vector<32x64xf32>
    %cst_8 = arith.constant dense<0.000000e+00> : vector<8x64xf32>
    %19 = tpu.matmul %9, %18, %cst_8 {dimension_numbers = #tpu.dot_dimension_numbers<[1], [0], [0], [1], [0, 0, 1, 1], [], []>} : vector<8x32xf32>, vector<32x64xf32>, vector<8x64xf32> -> vector<8x64xf32>
    %c0_9 = arith.constant 0 : index
    %c0_10 = arith.constant 0 : index
    %20 = vector.load %arg4[%c0_9, %c0_10] : memref<1x64xf32, #tpu.memory_space<vmem>>, vector<1x64xf32>
    %21 = vector.broadcast %20 : vector<1x64xf32> to vector<8x64xf32>
    %22 = arith.addf %19, %21 : vector<8x64xf32>
    %c0_11 = arith.constant 0 : index
    %c0_12 = arith.constant 0 : index
    %23 = vector.load %arg5[%c0_11, %c0_12] : memref<16x64xf32, #tpu.memory_space<vmem>>, vector<16x64xf32>
    %cst_13 = arith.constant dense<0.000000e+00> : vector<8x64xf32>
    %24 = tpu.matmul %17, %23, %cst_13 {dimension_numbers = #tpu.dot_dimension_numbers<[1], [0], [0], [1], [0, 0, 1, 1], [], []>} : vector<8x16xf32>, vector<16x64xf32>, vector<8x64xf32> -> vector<8x64xf32>
    %c0_14 = arith.constant 0 : index
    %c0_15 = arith.constant 0 : index
    %25 = vector.load %arg6[%c0_14, %c0_15] : memref<1x64xf32, #tpu.memory_space<vmem>>, vector<1x64xf32>
    %26 = vector.broadcast %25 : vector<1x64xf32> to vector<8x64xf32>
    %27 = arith.addf %24, %26 : vector<8x64xf32>
    %c0_16 = arith.constant 0 : index
    %c0_17 = arith.constant 0 : index
    %28 = vector.load %arg7[%c0_16, %c0_17] : memref<64x64xf32, #tpu.memory_space<vmem>>, vector<64x64xf32>
    %cst_18 = arith.constant dense<0.000000e+00> : vector<8x64xf32>
    %29 = tpu.matmul %22, %28, %cst_18 {dimension_numbers = #tpu.dot_dimension_numbers<[1], [0], [0], [1], [0, 0, 1, 1], [], []>} : vector<8x64xf32>, vector<64x64xf32>, vector<8x64xf32> -> vector<8x64xf32>
    %c0_19 = arith.constant 0 : index
    %c0_20 = arith.constant 0 : index
    %30 = vector.load %arg8[%c0_19, %c0_20] : memref<64x64xf32, #tpu.memory_space<vmem>>, vector<64x64xf32>
    %cst_21 = arith.constant dense<0.000000e+00> : vector<8x64xf32>
    %31 = tpu.matmul %29, %30, %cst_21 {dimension_numbers = #tpu.dot_dimension_numbers<[1], [0], [0], [1], [0, 0, 1, 1], [], []>} : vector<8x64xf32>, vector<64x64xf32>, vector<8x64xf32> -> vector<8x64xf32>
    %c0_22 = arith.constant 0 : index
    %c0_23 = arith.constant 0 : index
    %32 = vector.load %arg9[%c0_22, %c0_23] : memref<1x64xf32, #tpu.memory_space<vmem>>, vector<1x64xf32>
    %33 = vector.broadcast %32 : vector<1x64xf32> to vector<8x64xf32>
    %34 = arith.addf %31, %33 : vector<8x64xf32>
    %35 = arith.addf %34, %27 : vector<8x64xf32>
    %c0_24 = arith.constant 0 : index
    %c0_25 = arith.constant 0 : index
    %36 = vector.load %arg10[%c0_24, %c0_25] : memref<8x64xf32, #tpu.memory_space<vmem>>, vector<8x64xf32>
    tpu.vector_store %arg10[%c0_24, %c0_25], %35 {strides = array<i32>} : memref<8x64xf32, #tpu.memory_space<vmem>>, vector<8x64xf32>,
    return
  }
  func.func @transform_0(%arg0: i32) -> (i32, i32) {
    %c0_i32 = arith.constant 0 : i32
    %c0_i32_0 = arith.constant 0 : i32
    return %arg0, %c0_i32 : i32, i32
  }
  func.func @transform_1(%arg0: i32) -> (i32, i32) {
    %c0_i32 = arith.constant 0 : i32
    %c0_i32_0 = arith.constant 0 : i32
    return %arg0, %c0_i32 : i32, i32
  }
  func.func @transform_2(%arg0: i32) -> (i32, i32) {
    %c0_i32 = arith.constant 0 : i32
    %c0_i32_0 = arith.constant 0 : i32
    %c0_i32_1 = arith.constant 0 : i32
    return %c0_i32, %c0_i32_0 : i32, i32
  }
  func.func @transform_3(%arg0: i32) -> (i32, i32) {
    %c0_i32 = arith.constant 0 : i32
    %c0_i32_0 = arith.constant 0 : i32
    %c0_i32_1 = arith.constant 0 : i32
    return %c0_i32, %c0_i32_0 : i32, i32
  }
  func.func @transform_4(%arg0: i32) -> (i32, i32) {
    %c0_i32 = arith.constant 0 : i32
    %c0_i32_0 = arith.constant 0 : i32
    %c0_i32_1 = arith.constant 0 : i32
    return %c0_i32, %c0_i32_0 : i32, i32
  }
  func.func @transform_5(%arg0: i32) -> (i32, i32) {
    %c0_i32 = arith.constant 0 : i32
    %c0_i32_0 = arith.constant 0 : i32
    %c0_i32_1 = arith.constant 0 : i32
    return %c0_i32, %c0_i32_0 : i32, i32
  }
  func.func @transform_6(%arg0: i32) -> (i32, i32) {
    %c0_i32 = arith.constant 0 : i32
    %c0_i32_0 = arith.constant 0 : i32
    %c0_i32_1 = arith.constant 0 : i32
    return %c0_i32, %c0_i32_0 : i32, i32
  }
  func.func @transform_7(%arg0: i32) -> (i32, i32) {
    %c0_i32 = arith.constant 0 : i32
    %c0_i32_0 = arith.constant 0 : i32
    %c0_i32_1 = arith.constant 0 : i32
    return %c0_i32, %c0_i32_0 : i32, i32
  }
  func.func @transform_8(%arg0: i32) -> (i32, i32) {
    %c0_i32 = arith.constant 0 : i32
    %c0_i32_0 = arith.constant 0 : i32
    %c0_i32_1 = arith.constant 0 : i32
    return %c0_i32, %c0_i32_0 : i32, i32
  }
  func.func @transform_9(%arg0: i32) -> (i32, i32) {
    %c0_i32 = arith.constant 0 : i32
    %c0_i32_0 = arith.constant 0 : i32
    return %arg0, %c0_i32 : i32, i32
  }
}

</mosaic_0001>

<llo_original>
// kernel: tpu_custom_call.1
$region0: #{tpu_custom_call.1}
  #allocation0 [shape = 'u32[]', space=smem, size = 0x4, offset = 0x4, fixed_abs, tag = 'smem constant byte address 0x4 - core index']
  #allocation1 [shape = 'u32[144,128]{1,0:T(1,128)}', space=vmem, size = 0x12000, scoped, tag = 'internal scratch']
  %s0 = inlined_call_operand.hbm [shape: f32[8,32], index: 0, kind: input, shape index: {}]
  %s1 = inlined_call_operand.hbm [shape: f32[8,16], index: 1, kind: input, shape index: {}]
  %s2 = inlined_call_operand.hbm [shape: f32[32,64], index: 2, kind: input, shape index: {}]
  %s3 = inlined_call_operand.vmem [shape: f32[1,64], index: 3, kind: input, shape index: {}]
  %s4 = inlined_call_operand.hbm [shape: f32[16,64], index: 4, kind: input, shape index: {}]
  %s5 = inlined_call_operand.vmem [shape: f32[1,64], index: 5, kind: input, shape index: {}]
  %s6 = inlined_call_operand.hbm [shape: f32[64,64], index: 6, kind: input, shape index: {}]
  %s7 = inlined_call_operand.hbm [shape: f32[64,64], index: 7, kind: input, shape index: {}]
  %s8 = inlined_call_operand.vmem [shape: f32[1,64], index: 8, kind: input, shape index: {}]
  %s9 = inlined_call_operand.hbm [shape: f32[8,64], index: 9, kind: output, shape index: {}]
  %s10 = sld [smem:[#allocation0]]
  $region70: #{tpu_custom_call.1} parent=0
    _
  %s12 = ssub.s32 1, %s10
  %s13 = scalar_select 0, %s12, %s10
  $region1: #{tpu_custom_call.1} parent=0
    #allocation2 [shape = 'u8[4096]{0}', space=vmem, size = 0x1000, scoped, tag = 'input window, operand 0, single buffered']
    #allocation3 [shape = 's32[1]{0}', space=sflag, size = 0x4, scoped, tag = 'scoped memory for tpu_custom_call.1']
    #allocation4 [shape = 's32[1]{0}', space=sflag, size = 0x4, scoped, tag = 'scoped memory for tpu_custom_call.1']
    #allocation5 [shape = 'u8[4096]{0}', space=vmem, size = 0x1000, scoped, tag = 'input window, operand 1, single buffered']
    #allocation6 [shape = 's32[1]{0}', space=sflag, size = 0x4, scoped, tag = 'scoped memory for tpu_custom_call.1']
    #allocation7 [shape = 'u8[16384]{0}', space=vmem, size = 0x4000, scoped, tag = 'input window, operand 2, single buffered']
    #allocation8 [shape = 'u8[8192]{0}', space=vmem, size = 0x2000, scoped, tag = 'input window, operand 4, single buffered']
    #allocation9 [shape = 's32[1]{0}', space=sflag, size = 0x4, scoped, tag = 'scoped memory for tpu_custom_call.1']
    #allocation10 [shape = 'u8[32768]{0}', space=vmem, size = 0x8000, scoped, tag = 'input window, operand 6, single buffered']
    #allocation11 [shape = 'u8[32768]{0}', space=vmem, size = 0x8000, scoped, tag = 'input window, operand 7, single buffered']
    #allocation12 [shape = 's32[1]{0}', space=sflag, size = 0x4, scoped, tag = 'scoped memory for tpu_custom_call.1']
    #allocation13 [shape = 'u8[4096]{0}', space=vmem, size = 0x1000, scoped, tag = 'output window, operand 0, single buffered']
    %14 = vsyncpa [#allocation3], 0
    %15 = vsyncpa [#allocation6], 0
    %16 = vsyncpa [#allocation9], 0
    %17 = vsyncpa [#allocation12], 0
    %18 = vsyncpa [#allocation4], 0
    // Predicated region
    $region2: #{tpu_custom_call.1} parent=1 // pred_check
      _
    $region3: #{tpu_custom_call.1} parent=1 // pred_check_branch
      %20 = sbr.rel (0) target = $region5
    $region4: #{tpu_custom_call.1} parent=1 // pred_region
      %s22 = ssub.s32 128, 128
      %23 = vsyncadd [#allocation3], %s22
      %s25 = sshll.u32 [#allocation2], 4
      %s26 = int_to_ptr.vmem [resolvable:$true] %s25
      %28 = dma.hbm_to_vmem [thread:$0]  %s0, 128, %s26, [#allocation3]
    $region5: #{tpu_custom_call.1} parent=1 // pred_fallthru
      _
    // Predicated region
    $region6: #{tpu_custom_call.1} parent=1 // pred_check
      _
    $region7: #{tpu_custom_call.1} parent=1 // pred_check_branch
      %30 = sbr.rel (0) target = $region9
    $region8: #{tpu_custom_call.1} parent=1 // pred_region
      %s32 = ssub.s32 128, 128
      %33 = vsyncadd [#allocation6], %s32
      %s35 = sshll.u32 [#allocation5], 4
      %s36 = int_to_ptr.vmem [resolvable:$true] %s35
      %38 = dma.hbm_to_vmem [thread:$0]  %s1, 128, %s36, [#allocation6]
    $region9: #{tpu_custom_call.1} parent=1 // pred_fallthru
      _
    // Predicated region
    $region10: #{tpu_custom_call.1} parent=1 // pred_check
      _
    $region11: #{tpu_custom_call.1} parent=1 // pred_check_branch
      %40 = sbr.rel (0) target = $region13
    $region12: #{tpu_custom_call.1} parent=1 // pred_region
      %s42 = ssub.s32 512, 512
      %43 = vsyncadd [#allocation6], %s42
      %s44 = sshll.u32 [#allocation7], 4
      %s45 = int_to_ptr.vmem [resolvable:$true] %s44
      %50 = dma.hbm_to_vmem [thread:$0]  %s2, 512, %s45, [#allocation6], 128, 128, 8
    $region13: #{tpu_custom_call.1} parent=1 // pred_fallthru
      _
    // Predicated region
    $region14: #{tpu_custom_call.1} parent=1 // pred_check
      _
    $region15: #{tpu_custom_call.1} parent=1 // pred_check_branch
      %52 = sbr.rel (0) target = $region17
    $region16: #{tpu_custom_call.1} parent=1 // pred_region
      _
    $region17: #{tpu_custom_call.1} parent=1 // pred_fallthru
      _
    // Predicated region
    $region18: #{tpu_custom_call.1} parent=1 // pred_check
      _
    $region19: #{tpu_custom_call.1} parent=1 // pred_check_branch
      %54 = sbr.rel (0) target = $region21
    $region20: #{tpu_custom_call.1} parent=1 // pred_region
      %s56 = ssub.s32 256, 256
      %57 = vsyncadd [#allocation9], %s56
      %s58 = sshll.u32 [#allocation8], 4
      %s59 = int_to_ptr.vmem [resolvable:$true] %s58
      %64 = dma.hbm_to_vmem [thread:$0]  %s4, 256, %s59, [#allocation9], 128, 128, 8
    $region21: #{tpu_custom_call.1} parent=1 // pred_fallthru
      _
    // Predicated region
    $region22: #{tpu_custom_call.1} parent=1 // pred_check
      _
    $region23: #{tpu_custom_call.1} parent=1 // pred_check_branch
      %66 = sbr.rel (0) target = $region25
    $region24: #{tpu_custom_call.1} parent=1 // pred_region
      _
    $region25: #{tpu_custom_call.1} parent=1 // pred_fallthru
      _
    // Predicated region
    $region26: #{tpu_custom_call.1} parent=1 // pred_check
      _
    $region27: #{tpu_custom_call.1} parent=1 // pred_check_branch
      %68 = sbr.rel (0) target = $region29
    $region28: #{tpu_custom_call.1} parent=1 // pred_region
      %s70 = ssub.s32 1024, 1024
      %71 = vsyncadd [#allocation9], %s70
      %s72 = sshll.u32 [#allocation10], 4
      %s73 = int_to_ptr.vmem [resolvable:$true] %s72
      %78 = dma.hbm_to_vmem [thread:$0]  %s6, 1024, %s73, [#allocation9], 128, 128, 8
    $region29: #{tpu_custom_call.1} parent=1 // pred_fallthru
      _
    // Predicated region
    $region30: #{tpu_custom_call.1} parent=1 // pred_check
      _
    $region31: #{tpu_custom_call.1} parent=1 // pred_check_branch
      %80 = sbr.rel (0) target = $region33
    $region32: #{tpu_custom_call.1} parent=1 // pred_region
      %s82 = ssub.s32 1024, 1024
      %83 = vsyncadd [#allocation12], %s82
      %s84 = sshll.u32 [#allocation11], 4
      %s85 = int_to_ptr.vmem [resolvable:$true] %s84
      %90 = dma.hbm_to_vmem [thread:$0]  %s7, 1024, %s85, [#allocation12], 128, 128, 8
    $region33: #{tpu_custom_call.1} parent=1 // pred_fallthru
      _
    // Predicated region
    $region34: #{tpu_custom_call.1} parent=1 // pred_check
      _
    $region35: #{tpu_custom_call.1} parent=1 // pred_check_branch
      %92 = sbr.rel (0) target = $region37
    $region36: #{tpu_custom_call.1} parent=1 // pred_region
      _
    $region37: #{tpu_custom_call.1} parent=1 // pred_fallthru
      _
    // Predicated region
    $region38: #{tpu_custom_call.1} parent=1 // pred_check
      _
    $region39: #{tpu_custom_call.1} parent=1 // pred_check_branch
      %94 = sbr.rel (0) target = $region41
    $region40: #{tpu_custom_call.1} parent=1 // pred_region
      %95 = dma.done [#allocation3], 128
    $region41: #{tpu_custom_call.1} parent=1 // pred_fallthru
      _
    // Predicated region
    $region42: #{tpu_custom_call.1} parent=1 // pred_check
      _
    $region43: #{tpu_custom_call.1} parent=1 // pred_check_branch
      %97 = sbr.rel (0) target = $region45
    $region44: #{tpu_custom_call.1} parent=1 // pred_region
      %98 = dma.done [#allocation6], 128
    $region45: #{tpu_custom_call.1} parent=1 // pred_fallthru
      _
    // Predicated region
    $region46: #{tpu_custom_call.1} parent=1 // pred_check
      _
    $region47: #{tpu_custom_call.1} parent=1 // pred_check_branch
      %100 = sbr.rel (0) target = $region49
    $region48: #{tpu_custom_call.1} parent=1 // pred_region
      %101 = dma.done [#allocation6], 512
    $region49: #{tpu_custom_call.1} parent=1 // pred_fallthru
      _
    // Predicated region
    $region50: #{tpu_custom_call.1} parent=1 // pred_check
      _
    $region51: #{tpu_custom_call.1} parent=1 // pred_check_branch
      %103 = sbr.rel (0) target = $region53
    $region52: #{tpu_custom_call.1} parent=1 // pred_region
      %104 = dma.done [#allocation9], 256
    $region53: #{tpu_custom_call.1} parent=1 // pred_fallthru
      _
    // Predicated region
    $region54: #{tpu_custom_call.1} parent=1 // pred_check
      _
    $region55: #{tpu_custom_call.1} parent=1 // pred_check_branch
      %106 = sbr.rel (0) target = $region57
    $region56: #{tpu_custom_call.1} parent=1 // pred_region
      %107 = dma.done [#allocation9], 1024
    $region57: #{tpu_custom_call.1} parent=1 // pred_fallthru
      _
    // Predicated region
    $region58: #{tpu_custom_call.1} parent=1 // pred_check
      _
    $region59: #{tpu_custom_call.1} parent=1 // pred_check_branch
      %109 = sbr.rel (0) target = $region61
    $region60: #{tpu_custom_call.1} parent=1 // pred_region
      %110 = dma.done [#allocation12], 1024
    $region61: #{tpu_custom_call.1} parent=1 // pred_fallthru
      _
    %v111 = vld [vmem:[#allocation2] sm:$0xff]
    %v112 = vld [vmem:[#allocation5] sm:$0xff]
    %v113 = vmul.f32 %v111, %v111
    %vm114 = vcmask 261120
    %v115 = vsel %vm114, %v113, 0.0
    %116 = vadd.xlane.f32.xlu0 %v115
    %v117 = vpop.xlane.xlu0 %116
    %v118 = vmax.f32 %v117, 1e-24
    %v119 = vrsqrt.pop %v118
    %v120 = vmul.f32 %v111, %v119
    %v121 = vmul.f32 %v112, %v112
    %vm122 = vcmask 130048
    %v123 = vsel %vm122, %v121, 0.0
    %124 = vadd.xlane.f32.xlu0 %v123
    %v125 = vpop.xlane.xlu0 %124
    %v126 = vmax.f32 %v125, 1e-24
    %v127 = vrsqrt.pop %v126
    %v128 = vmul.f32 %v112, %v127
    %v129 = vld [vmem:[#allocation7] sm:$0xff]
    %v130 = vld [vmem:[#allocation7 + $0x8] sm:$0xff]
    %v131 = vld [vmem:[#allocation7 + $0x10] sm:$0xff]
    %v132 = vld [vmem:[#allocation7 + $0x18] sm:$0xff]
    %v133 = vld [vmem:[%s3] sm:$0x1]
    %v135 = vlaneseq
    %v136 = vshrl.u32 %v135, 7
    %v137 = vsub.s32 0, %v136
    %v138 = vrot.slane %v133, %v137
    %v141 = vsel %vm114, %v120, 0
    %143 = vmatprep.subr.mxu0 0.0
    %144 = vmatpush1.msra.mxu0 0.0
    %145 = vmatprep.subr.mxu0 0.0
    %146 = vmatpush1.msra.mxu0 0.0
    %147 = vmatprep.subr.mxu0 0.0
    %148 = vmatpush1.msra.mxu0 0.0
    %149 = vmatprep.subr.mxu0 0.0
    %150 = vmatpush1.msra.mxu0 0.0
    %151 = vmatprep.subr.mxu0 0.0
    %152 = vmatpush1.msra.mxu0 0.0
    %153 = vmatprep.subr.mxu0 0.0
    %154 = vmatpush1.msra.mxu0 0.0
    %155 = vmatprep.subr.mxu0 0.0
    %156 = vmatpush1.msra.mxu0 0.0
    %157 = vmatprep.subr.mxu0 0.0
    %158 = vmatpush1.msra.mxu0 0.0
    %159 = vmatprep.subr.mxu0 0.0
    %160 = vmatpush1.msra.mxu0 0.0
    %161 = vmatprep.subr.mxu0 0.0
    %162 = vmatpush1.msra.mxu0 0.0
    %163 = vmatprep.subr.mxu0 0.0
    %164 = vmatpush1.msra.mxu0 0.0
    %165 = vmatprep.subr.mxu0 0.0
    %166 = vmatpush1.msra.mxu0 0.0
    %167 = vmatprep.subr.mxu0 0.0
    %168 = vmatpush1.msra.mxu0 %v132
    %169 = vmatprep.subr.mxu0 0.0
    %170 = vmatpush1.msra.mxu0 %v131
    %171 = vmatprep.subr.mxu0 0.0
    %172 = vmatpush1.msra.mxu0 %v130
    %173 = vmatprep.subr.mxu0 0.0
    %174 = vmatpush1.msra.mxu0 %v129
    %175 = vmatprep.subr.mxu0 0.0
    %176 = vmatpush2.msra.mxu0 0.0
    %177 = vmatprep.subr.mxu0 0.0
    %178 = vmatpush2.msra.mxu0 0.0
    %179 = vmatprep.subr.mxu0 0.0
    %180 = vmatpush2.msra.mxu0 0.0
    %181 = vmatprep.subr.mxu0 0.0
    %182 = vmatpush2.msra.mxu0 0.0
    %183 = vmatprep.subr.mxu0 0.0
    %184 = vmatpush2.msra.mxu0 0.0
    %185 = vmatprep.subr.mxu0 0.0
    %186 = vmatpush2.msra.mxu0 0.0
    %187 = vmatprep.subr.mxu0 0.0
    %188 = vmatpush2.msra.mxu0 0.0
    %189 = vmatprep.subr.mxu0 0.0
    %190 = vmatpush2.msra.mxu0 0.0
    %191 = vmatprep.subr.mxu0 0.0
    %192 = vmatpush2.msra.mxu0 0.0
    %193 = vmatprep.subr.mxu0 0.0
    %194 = vmatpush2.msra.mxu0 0.0
    %195 = vmatprep.subr.mxu0 0.0
    %196 = vmatpush2.msra.mxu0 0.0
    %197 = vmatprep.subr.mxu0 0.0
    %198 = vmatpush2.msra.mxu0 0.0
    %199 = vmatprep.subr.mxu0 0.0
    %200 = vmatpush2.msra.mxu0 0.0
    %201 = vmatprep.subr.mxu0 0.0
    %202 = vmatpush2.msra.mxu0 0.0
    %203 = vmatprep.subr.mxu0 0.0
    %204 = vmatpush2.msra.mxu0 0.0
    %205 = vmatprep.subr.mxu0 0.0
    %206 = vmatpush2.msra.mxu0 0.0
    %207 = vmatprep.mubr.f32.mxu0 0.0
    %208 = vmatmul.mubr.f32.gmra.mxu0 %v141
    %v209 = vpop.f32.mrf.mxu0
    %v210 = vadd.f32 %v138, %v209
    %v211 = vpop.f32.mrf.mxu0
    %212 = vdwg.mxu0
    %v213 = vld [vmem:[#allocation8] sm:$0xff]
    %v214 = vld [vmem:[#allocation8 + $0x8] sm:$0xff]
    %v215 = vld [vmem:[%s5] sm:$0x1]
    %v217 = vlaneseq
    %v218 = vshrl.u32 %v217, 7
    %v219 = vsub.s32 0, %v218
    %v220 = vrot.slane %v215, %v219
    %v223 = vsel %vm122, %v128, 0
    %225 = vmatprep.subr.mxu0 0.0
    %226 = vmatpush1.msra.mxu0 0.0
    %227 = vmatprep.subr.mxu0 0.0
    %228 = vmatpush1.msra.mxu0 0.0
    %229 = vmatprep.subr.mxu0 0.0
    %230 = vmatpush1.msra.mxu0 0.0
    %231 = vmatprep.subr.mxu0 0.0
    %232 = vmatpush1.msra.mxu0 0.0
    %233 = vmatprep.subr.mxu0 0.0
    %234 = vmatpush1.msra.mxu0 0.0
    %235 = vmatprep.subr.mxu0 0.0
    %236 = vmatpush1.msra.mxu0 0.0
    %237 = vmatprep.subr.mxu0 0.0
    %238 = vmatpush1.msra.mxu0 0.0
    %239 = vmatprep.subr.mxu0 0.0
    %240 = vmatpush1.msra.mxu0 0.0
    %241 = vmatprep.subr.mxu0 0.0
    %242 = vmatpush1.msra.mxu0 0.0
    %243 = vmatprep.subr.mxu0 0.0
    %244 = vmatpush1.msra.mxu0 0.0
    %245 = vmatprep.subr.mxu0 0.0
    %246 = vmatpush1.msra.mxu0 0.0
    %247 = vmatprep.subr.mxu0 0.0
    %248 = vmatpush1.msra.mxu0 0.0
    %249 = vmatprep.subr.mxu0 0.0
    %250 = vmatpush1.msra.mxu0 0.0
    %251 = vmatprep.subr.mxu0 0.0
    %252 = vmatpush1.msra.mxu0 0.0
    %253 = vmatprep.subr.mxu0 0.0
    %254 = vmatpush1.msra.mxu0 %v214
    %255 = vmatprep.subr.mxu0 0.0
    %256 = vmatpush1.msra.mxu0 %v213
    %257 = vmatprep.subr.mxu0 0.0
    %258 = vmatpush2.msra.mxu0 0.0
    %259 = vmatprep.subr.mxu0 0.0
    %260 = vmatpush2.msra.mxu0 0.0
    %261 = vmatprep.subr.mxu0 0.0
    %262 = vmatpush2.msra.mxu0 0.0
    %263 = vmatprep.subr.mxu0 0.0
    %264 = vmatpush2.msra.mxu0 0.0
    %265 = vmatprep.subr.mxu0 0.0
    %266 = vmatpush2.msra.mxu0 0.0
    %267 = vmatprep.subr.mxu0 0.0
    %268 = vmatpush2.msra.mxu0 0.0
    %269 = vmatprep.subr.mxu0 0.0
    %270 = vmatpush2.msra.mxu0 0.0
    %271 = vmatprep.subr.mxu0 0.0
    %272 = vmatpush2.msra.mxu0 0.0
    %273 = vmatprep.subr.mxu0 0.0
    %274 = vmatpush2.msra.mxu0 0.0
    %275 = vmatprep.subr.mxu0 0.0
    %276 = vmatpush2.msra.mxu0 0.0
    %277 = vmatprep.subr.mxu0 0.0
    %278 = vmatpush2.msra.mxu0 0.0
    %279 = vmatprep.subr.mxu0 0.0
    %280 = vmatpush2.msra.mxu0 0.0
    %281 = vmatprep.subr.mxu0 0.0
    %282 = vmatpush2.msra.mxu0 0.0
    %283 = vmatprep.subr.mxu0 0.0
    %284 = vmatpush2.msra.mxu0 0.0
    %285 = vmatprep.subr.mxu0 0.0
    %286 = vmatpush2.msra.mxu0 0.0
    %287 = vmatprep.subr.mxu0 0.0
    %288 = vmatpush2.msra.mxu0 0.0
    %289 = vmatprep.mubr.f32.mxu0 0.0
    %290 = vmatmul.mubr.f32.gmra.mxu0 %v223
    %v291 = vpop.f32.mrf.mxu0
    %v292 = vadd.f32 %v220, %v291
    %v293 = vpop.f32.mrf.mxu0
    %294 = vdwg.mxu0
    %v295 = vld [vmem:[#allocation10] sm:$0xff]
    %v296 = vld [vmem:[#allocation10 + $0x8] sm:$0xff]
    %v297 = vld [vmem:[#allocation10 + $0x10] sm:$0xff]
    %v298 = vld [vmem:[#allocation10 + $0x18] sm:$0xff]
    %v299 = vld [vmem:[#allocation10 + $0x20] sm:$0xff]
    %v300 = vld [vmem:[#allocation10 + $0x28] sm:$0xff]
    %v301 = vld [vmem:[#allocation10 + $0x30] sm:$0xff]
    %v302 = vld [vmem:[#allocation10 + $0x38] sm:$0xff]
    %vm303 = vcmask 523264
    %v305 = vsel %vm303, %v210, 0
    %307 = vmatprep.subr.mxu0 0.0
    %308 = vmatpush1.msra.mxu0 0.0
    %309 = vmatprep.subr.mxu0 0.0
    %310 = vmatpush1.msra.mxu0 0.0
    %311 = vmatprep.subr.mxu0 0.0
    %312 = vmatpush1.msra.mxu0 0.0
    %313 = vmatprep.subr.mxu0 0.0
    %314 = vmatpush1.msra.mxu0 0.0
    %315 = vmatprep.subr.mxu0 0.0
    %316 = vmatpush1.msra.mxu0 0.0
    %317 = vmatprep.subr.mxu0 0.0
    %318 = vmatpush1.msra.mxu0 0.0
    %319 = vmatprep.subr.mxu0 0.0
    %320 = vmatpush1.msra.mxu0 0.0
    %321 = vmatprep.subr.mxu0 0.0
    %322 = vmatpush1.msra.mxu0 0.0
    %323 = vmatprep.subr.mxu0 0.0
    %324 = vmatpush1.msra.mxu0 %v302
    %325 = vmatprep.subr.mxu0 0.0
    %326 = vmatpush1.msra.mxu0 %v301
    %327 = vmatprep.subr.mxu0 0.0
    %328 = vmatpush1.msra.mxu0 %v300
    %329 = vmatprep.subr.mxu0 0.0
    %330 = vmatpush1.msra.mxu0 %v299
    %331 = vmatprep.subr.mxu0 0.0
    %332 = vmatpush1.msra.mxu0 %v298
    %333 = vmatprep.subr.mxu0 0.0
    %334 = vmatpush1.msra.mxu0 %v297
    %335 = vmatprep.subr.mxu0 0.0
    %336 = vmatpush1.msra.mxu0 %v296
    %337 = vmatprep.subr.mxu0 0.0
    %338 = vmatpush1.msra.mxu0 %v295
    %339 = vmatprep.subr.mxu0 0.0
    %340 = vmatpush2.msra.mxu0 0.0
    %341 = vmatprep.subr.mxu0 0.0
    %342 = vmatpush2.msra.mxu0 0.0
    %343 = vmatprep.subr.mxu0 0.0
    %344 = vmatpush2.msra.mxu0 0.0
    %345 = vmatprep.subr.mxu0 0.0
    %346 = vmatpush2.msra.mxu0 0.0
    %347 = vmatprep.subr.mxu0 0.0
    %348 = vmatpush2.msra.mxu0 0.0
    %349 = vmatprep.subr.mxu0 0.0
    %350 = vmatpush2.msra.mxu0 0.0
    %351 = vmatprep.subr.mxu0 0.0
    %352 = vmatpush2.msra.mxu0 0.0
    %353 = vmatprep.subr.mxu0 0.0
    %354 = vmatpush2.msra.mxu0 0.0
    %355 = vmatprep.subr.mxu0 0.0
    %356 = vmatpush2.msra.mxu0 0.0
    %357 = vmatprep.subr.mxu0 0.0
    %358 = vmatpush2.msra.mxu0 0.0
    %359 = vmatprep.subr.mxu0 0.0
    %360 = vmatpush2.msra.mxu0 0.0
    %361 = vmatprep.subr.mxu0 0.0
    %362 = vmatpush2.msra.mxu0 0.0
    %363 = vmatprep.subr.mxu0 0.0
    %364 = vmatpush2.msra.mxu0 0.0
    %365 = vmatprep.subr.mxu0 0.0
    %366 = vmatpush2.msra.mxu0 0.0
    %367 = vmatprep.subr.mxu0 0.0
    %368 = vmatpush2.msra.mxu0 0.0
    %369 = vmatprep.subr.mxu0 0.0
    %370 = vmatpush2.msra.mxu0 0.0
    %371 = vmatprep.mubr.f32.mxu0 0.0
    %372 = vmatmul.mubr.f32.gmra.mxu0 %v305
    %v373 = vpop.f32.mrf.mxu0
    %v374 = vadd.f32 0.0, %v373
    %v375 = vpop.f32.mrf.mxu0
    %376 = vdwg.mxu0
    %v377 = vld [vmem:[#allocation11] sm:$0xff]
    %v378 = vld [vmem:[#allocation11 + $0x8] sm:$0xff]
    %v379 = vld [vmem:[#allocation11 + $0x10] sm:$0xff]
    %v380 = vld [vmem:[#allocation11 + $0x18] sm:$0xff]
    %v381 = vld [vmem:[#allocation11 + $0x20] sm:$0xff]
    %v382 = vld [vmem:[#allocation11 + $0x28] sm:$0xff]
    %v383 = vld [vmem:[#allocation11 + $0x30] sm:$0xff]
    %v384 = vld [vmem:[#allocation11 + $0x38] sm:$0xff]
    %v385 = vld [vmem:[%s8] sm:$0x1]
    %v387 = vlaneseq
    %v388 = vshrl.u32 %v387, 7
    %v389 = vsub.s32 0, %v388
    %v390 = vrot.slane %v385, %v389
    %v393 = vsel %vm303, %v374, 0
    %395 = vmatprep.subr.mxu0 0.0
    %396 = vmatpush1.msra.mxu0 0.0
    %397 = vmatprep.subr.mxu0 0.0
    %398 = vmatpush1.msra.mxu0 0.0
    %399 = vmatprep.subr.mxu0 0.0
    %400 = vmatpush1.msra.mxu0 0.0
    %401 = vmatprep.subr.mxu0 0.0
    %402 = vmatpush1.msra.mxu0 0.0
    %403 = vmatprep.subr.mxu0 0.0
    %404 = vmatpush1.msra.mxu0 0.0
    %405 = vmatprep.subr.mxu0 0.0
    %406 = vmatpush1.msra.mxu0 0.0
    %407 = vmatprep.subr.mxu0 0.0
    %408 = vmatpush1.msra.mxu0 0.0
    %409 = vmatprep.subr.mxu0 0.0
    %410 = vmatpush1.msra.mxu0 0.0
    %411 = vmatprep.subr.mxu0 0.0
    %412 = vmatpush1.msra.mxu0 %v384
    %413 = vmatprep.subr.mxu0 0.0
    %414 = vmatpush1.msra.mxu0 %v383
    %415 = vmatprep.subr.mxu0 0.0
    %416 = vmatpush1.msra.mxu0 %v382
    %417 = vmatprep.subr.mxu0 0.0
    %418 = vmatpush1.msra.mxu0 %v381
    %419 = vmatprep.subr.mxu0 0.0
    %420 = vmatpush1.msra.mxu0 %v380
    %421 = vmatprep.subr.mxu0 0.0
    %422 = vmatpush1.msra.mxu0 %v379
    %423 = vmatprep.subr.mxu0 0.0
    %424 = vmatpush1.msra.mxu0 %v378
    %425 = vmatprep.subr.mxu0 0.0
    %426 = vmatpush1.msra.mxu0 %v377
    %427 = vmatprep.subr.mxu0 0.0
    %428 = vmatpush2.msra.mxu0 0.0
    %429 = vmatprep.subr.mxu0 0.0
    %430 = vmatpush2.msra.mxu0 0.0
    %431 = vmatprep.subr.mxu0 0.0
    %432 = vmatpush2.msra.mxu0 0.0
    %433 = vmatprep.subr.mxu0 0.0
    %434 = vmatpush2.msra.mxu0 0.0
    %435 = vmatprep.subr.mxu0 0.0
    %436 = vmatpush2.msra.mxu0 0.0
    %437 = vmatprep.subr.mxu0 0.0
    %438 = vmatpush2.msra.mxu0 0.0
    %439 = vmatprep.subr.mxu0 0.0
    %440 = vmatpush2.msra.mxu0 0.0
    %441 = vmatprep.subr.mxu0 0.0
    %442 = vmatpush2.msra.mxu0 0.0
    %443 = vmatprep.subr.mxu0 0.0
    %444 = vmatpush2.msra.mxu0 0.0
    %445 = vmatprep.subr.mxu0 0.0
    %446 = vmatpush2.msra.mxu0 0.0
    %447 = vmatprep.subr.mxu0 0.0
    %448 = vmatpush2.msra.mxu0 0.0
    %449 = vmatprep.subr.mxu0 0.0
    %450 = vmatpush2.msra.mxu0 0.0
    %451 = vmatprep.subr.mxu0 0.0
    %452 = vmatpush2.msra.mxu0 0.0
    %453 = vmatprep.subr.mxu0 0.0
    %454 = vmatpush2.msra.mxu0 0.0
    %455 = vmatprep.subr.mxu0 0.0
    %456 = vmatpush2.msra.mxu0 0.0
    %457 = vmatprep.subr.mxu0 0.0
    %458 = vmatpush2.msra.mxu0 0.0
    %459 = vmatprep.mubr.f32.mxu0 0.0
    %460 = vmatmul.mubr.f32.gmra.mxu0 %v393
    %v461 = vpop.f32.mrf.mxu0
    %v462 = vadd.f32 %v390, %v461
    %v463 = vpop.f32.mrf.mxu0
    %464 = vdwg.mxu0
    %v465 = vadd.f32 %v462, %v292
    %466 = vst.msk [vmem:[#allocation13] sm:$0xff] %vm303, %v465
    // Predicated region
    $region62: #{tpu_custom_call.1} parent=1 // pred_check
      _
    $region63: #{tpu_custom_call.1} parent=1 // pred_check_branch
      %468 = sbr.rel (0) target = $region65
    $region64: #{tpu_custom_call.1} parent=1 // pred_region
      %s470 = ssub.s32 128, 128
      %471 = vsyncadd [#allocation4], %s470
      %s473 = sshll.u32 [#allocation13], 4
      %s474 = int_to_ptr.vmem [resolvable:$true] %s473
      %476 = dma.vmem_to_hbm [thread:$0]  %s474, 128, %s9, [#allocation4]
    $region65: #{tpu_custom_call.1} parent=1 // pred_fallthru
      _
    // Predicated region
    $region66: #{tpu_custom_call.1} parent=1 // pred_check
      _
    $region67: #{tpu_custom_call.1} parent=1 // pred_check_branch
      %478 = sbr.rel (0) target = $region69
    $region68: #{tpu_custom_call.1} parent=1 // pred_region
      %479 = dma.done [#allocation4], 128
    $region69: #{tpu_custom_call.1} parent=1 // pred_fallthru
      _
    %480 = vsyncpa [#allocation3], 1
    %481 = vsyncpa [#allocation6], 1
    %482 = vsyncpa [#allocation9], 1
    %483 = vsyncpa [#allocation12], 1
    %484 = vsyncpa [#allocation4], 1

</llo_original>
